<compile_context>
chip_gen: v5e
topology: v5e:2x2
jax: 0.10.0
libtpu: 0.0.40
codegen_flags: <defaults>
</compile_context>

<pallas_src>
import functools

import jax
import jax.numpy as jnp
from jax.experimental import pallas as pl
from jax.experimental.pallas import tpu as pltpu


def _glu_small_c_kernel(x_ref, w_ref, b_ref, o_ref, *, C):
    # x_ref : (bn, C, tl) VMEM tile
    # w_ref : (C, C)      SMEM (read as scalars)
    # b_ref : (C,)        SMEM (read as scalars)
    # o_ref : (bn, C, tl) VMEM tile
    x = x_ref[...]                                    # single load of the block
    for o in range(C):
        # lin[:, o, :] = sum_c W[o, c] * x[:, c, :] + b[o]
        # f32 SMEM scalar * (f32|bf16) vector promotes to f32 -> f32 accumulation.
        acc = w_ref[o, 0] * x[:, 0, :]
        for c in range(1, C):
            acc = acc + w_ref[o, c] * x[:, c, :]
        acc = acc + b_ref[o]
        # sigmoid of the *pre-linear* input, per channel, in the input dtype
        # (bf16 EUP/VPU are native on v6e/v7x).
        sig = jax.nn.sigmoid(x[:, o, :])
        o_ref[:, o, :] = (acc * sig).astype(o_ref.dtype)


def _glu_mxu_kernel(x_ref, w_ref, b_ref, o_ref, *, bn):
    # x_ref : (bn, C, tl) VMEM tile
    # w_ref : (C, C)      VMEM resident (x's dtype)
    # b_ref : (C, 1)      VMEM resident (f32)
    # o_ref : (bn, C, tl)
    w = w_ref[...]
    b = b_ref[...]
    for i in range(bn):                               # bn is small and static
        xi = x_ref[i]                                 # (C, tl)
        lin = jnp.dot(w, xi, preferred_element_type=jnp.float32) + b
        sig = jax.nn.sigmoid(xi)
        o_ref[i] = (lin * sig).astype(o_ref.dtype)


def glu_forward(x_nchw, weight, bias, *, target_block_bytes=1 << 20,
                small_c_threshold=16):
    """x_nchw: (N, C, H, W); weight: (C, C) as in nn.Linear; bias: (C,)."""
    N, C, H, W = x_nchw.shape
    HW = H * W
    x3d = x_nchw.reshape(N, C, HW)                    # free: NCHW is contiguous
    itemsize = x3d.dtype.itemsize

    # ---- tile selection: aim for ~1 MiB per block (memory-bound regime) ----
    lanes_target = max(128, target_block_bytes // (C * itemsize))
    if HW <= lanes_target:
        tl = HW                                       # full spatial extent
    else:
        tl = max(128, (lanes_target // 128) * 128)    # lane-dense, masked edge

    bn = 1
    block_bytes = C * tl * itemsize
    if block_bytes < target_block_bytes and N > 1:
        bn = int(min(N, max(1, target_block_bytes // block_bytes)))

    small_c = C <= small_c_threshold
    if not small_c:
        bn = min(bn, 8)                               # MXU path unrolls over bn

    # keep >= 2 grid steps when possible so v7x's two TensorCores both get work
    if pl.cdiv(N, bn) * pl.cdiv(HW, tl) == 1:
        if HW >= 256:
            tl = ((pl.cdiv(HW, 2) + 127) // 128) * 128
        elif N >= 2:
            bn = pl.cdiv(N, 2)

    grid = (pl.cdiv(N, bn), pl.cdiv(HW, tl))

    if small_c:
        kernel = functools.partial(_glu_small_c_kernel, C=C)
        w_arg = weight.astype(jnp.float32)
        b_arg = bias.astype(jnp.float32)
        w_spec = pl.BlockSpec(memory_space=pltpu.MemorySpace.SMEM)
        b_spec = pl.BlockSpec(memory_space=pltpu.MemorySpace.SMEM)
    else:
        kernel = functools.partial(_glu_mxu_kernel, bn=bn)
        w_arg = weight.astype(x3d.dtype)              # bf16 x bf16 MXU fast path
        b_arg = bias.reshape(C, 1).astype(jnp.float32)
        w_spec = pl.BlockSpec((C, C), lambda b, s: (0, 0))
        b_spec = pl.BlockSpec((C, 1), lambda b, s: (0, 0))

    cost = pl.CostEstimate(
        flops=2 * N * C * C * HW + N * C * HW,
        transcendentals=N * C * HW,
        bytes_accessed=2 * N * C * HW * itemsize + C * C * 4 + C * 4,
    )

    out3d = pl.pallas_call(
        kernel,
        out_shape=jax.ShapeDtypeStruct((N, C, HW), x3d.dtype),
        grid_spec=pltpu.PrefetchScalarGridSpec(
            num_scalar_prefetch=0,
            grid=grid,
            in_specs=[
                pl.BlockSpec((bn, C, tl), lambda b, s: (b, 0, s)),  # x tile
                w_spec,                                             # W resident
                b_spec,                                             # b resident
            ],
            out_specs=pl.BlockSpec((bn, C, tl), lambda b, s: (b, 0, s)),
        ),
        compiler_params=pltpu.CompilerParams(
            dimension_semantics=("parallel", "parallel"),
            vmem_limit_bytes=32 << 20,
        ),
        cost_estimate=cost,
    )(x3d, w_arg, b_arg)

    return out3d.reshape(N, C, H, W)


if __name__ == "__main__":
    key = jax.random.PRNGKey(0)
    k_x, k_w, k_b = jax.random.split(key, 3)

    N, C, H, W = 2, 4, 16, 16
    x = jax.random.normal(k_x, (N, C, H, W), dtype=jnp.float32)

    # Deterministic nn.Linear(C, C)-style init: U(-1/sqrt(C), 1/sqrt(C))
    bound = 1.0 / jnp.sqrt(jnp.float32(C))
    weight = jax.random.uniform(k_w, (C, C), jnp.float32, -bound, bound)
    bias = jax.random.uniform(k_b, (C,), jnp.float32, -bound, bound)

    out = glu_forward(x, weight, bias)
    jax.block_until_ready(out)

    # Reference check in plain JAX (same math as the PyTorch module).
    lin_ref = jnp.einsum("nchw,oc->nohw", x, weight) + bias[None, :, None, None]
    ref = lin_ref * jax.nn.sigmoid(x)
    assert out.shape == (N, C, H, W)
    assert jnp.allclose(out, ref, atol=1e-5, rtol=1e-5)

    print("KERNEL_OK")
</pallas_src>

<mosaic_0001>
module attributes {stable_mosaic.version = 11 : i64} {
  func.func @_glu_small_c_kernel(%arg0: i32, %arg1: i32, %arg2: memref<2x4x128xf32, #tpu.memory_space<vmem>>, %arg3: memref<4x4xf32, #tpu.memory_space<smem>>, %arg4: memref<4xf32, #tpu.memory_space<smem>>, %arg5: memref<2x4x128xf32, #tpu.memory_space<vmem>>) attributes {dimension_semantics = [#tpu.dimension_semantics<parallel>, #tpu.dimension_semantics<parallel>], iteration_bounds = array<i64: 1, 2>, scalar_prefetch = 0 : i64, scratch_operands = 0 : i64, tpu.core_type = #tpu.core_type<tc>, window_params = [{transform_indices = @transform_0, window_bounds = array<i64: 2, 4, 128>}, {transform_indices = @transform_1, window_bounds = array<i64: 4, 4>}, {transform_indices = @transform_2, window_bounds = array<i64: 4>}, {transform_indices = @transform_3, window_bounds = array<i64: 2, 4, 128>}]} {
    %c0 = arith.constant 0 : index
    %c0_0 = arith.constant 0 : index
    %c0_1 = arith.constant 0 : index
    %0 = vector.load %arg2[%c0, %c0_0, %c0_1] : memref<2x4x128xf32, #tpu.memory_space<vmem>>, vector<2x4x128xf32>
    %c0_2 = arith.constant 0 : index
    %c0_3 = arith.constant 0 : index
    %1 = memref.load %arg3[%c0_2, %c0_3] : memref<4x4xf32, #tpu.memory_space<smem>>
    %2 = vector.extract_strided_slice %0 {offsets = [0, 0, 0], sizes = [2, 1, 128], strides = [1, 1, 1]} : vector<2x4x128xf32> to vector<2x1x128xf32>
    %3 = vector.shape_cast %2 : vector<2x1x128xf32> to vector<2x128xf32>
    %4 = vector.broadcast %1 : f32 to vector<2x128xf32>
    %5 = arith.mulf %4, %3 : vector<2x128xf32>
    %c0_4 = arith.constant 0 : index
    %c1 = arith.constant 1 : index
    %6 = memref.load %arg3[%c0_4, %c1] : memref<4x4xf32, #tpu.memory_space<smem>>
    %7 = vector.extract_strided_slice %0 {offsets = [0, 1, 0], sizes = [2, 1, 128], strides = [1, 1, 1]} : vector<2x4x128xf32> to vector<2x1x128xf32>
    %8 = vector.shape_cast %7 : vector<2x1x128xf32> to vector<2x128xf32>
    %9 = vector.broadcast %6 : f32 to vector<2x128xf32>
    %10 = arith.mulf %9, %8 : vector<2x128xf32>
    %11 = arith.addf %5, %10 : vector<2x128xf32>
    %c0_5 = arith.constant 0 : index
    %c2 = arith.constant 2 : index
    %12 = memref.load %arg3[%c0_5, %c2] : memref<4x4xf32, #tpu.memory_space<smem>>
    %13 = vector.extract_strided_slice %0 {offsets = [0, 2, 0], sizes = [2, 1, 128], strides = [1, 1, 1]} : vector<2x4x128xf32> to vector<2x1x128xf32>
    %14 = vector.shape_cast %13 : vector<2x1x128xf32> to vector<2x128xf32>
    %15 = vector.broadcast %12 : f32 to vector<2x128xf32>
    %16 = arith.mulf %15, %14 : vector<2x128xf32>
    %17 = arith.addf %11, %16 : vector<2x128xf32>
    %c0_6 = arith.constant 0 : index
    %c3 = arith.constant 3 : index
    %18 = memref.load %arg3[%c0_6, %c3] : memref<4x4xf32, #tpu.memory_space<smem>>
    %19 = vector.extract_strided_slice %0 {offsets = [0, 3, 0], sizes = [2, 1, 128], strides = [1, 1, 1]} : vector<2x4x128xf32> to vector<2x1x128xf32>
    %20 = vector.shape_cast %19 : vector<2x1x128xf32> to vector<2x128xf32>
    %21 = vector.broadcast %18 : f32 to vector<2x128xf32>
    %22 = arith.mulf %21, %20 : vector<2x128xf32>
    %23 = arith.addf %17, %22 : vector<2x128xf32>
    %c0_7 = arith.constant 0 : index
    %24 = memref.load %arg4[%c0_7] : memref<4xf32, #tpu.memory_space<smem>>
    %25 = vector.broadcast %24 : f32 to vector<2x128xf32>
    %26 = arith.addf %23, %25 : vector<2x128xf32>
    %27 = vector.extract_strided_slice %0 {offsets = [0, 0, 0], sizes = [2, 1, 128], strides = [1, 1, 1]} : vector<2x4x128xf32> to vector<2x1x128xf32>
    %28 = vector.shape_cast %27 : vector<2x1x128xf32> to vector<2x128xf32>
    %29 = arith.negf %28 : vector<2x128xf32>
    %30 = math.exp %29 : vector<2x128xf32>
    %cst = arith.constant 1.000000e+00 : f32
    %31 = vector.broadcast %cst : f32 to vector<2x128xf32>
    %32 = arith.addf %31, %30 : vector<2x128xf32>
    %33 = arith.divf %31, %32 : vector<2x128xf32>
    %34 = arith.mulf %26, %33 : vector<2x128xf32>
    %c0_8 = arith.constant 0 : index
    %c0_9 = arith.constant 0 : index
    %c0_10 = arith.constant 0 : index
    %35 = vector.load %arg5[%c0_8, %c0_9, %c0_10] : memref<2x4x128xf32, #tpu.memory_space<vmem>>, vector<2x1x128xf32>
    %36 = vector.shape_cast %35 : vector<2x1x128xf32> to vector<2x128xf32>
    %37 = vector.shape_cast %34 : vector<2x128xf32> to vector<2x1x128xf32>
    tpu.vector_store %arg5[%c0_8, %c0_9, %c0_10], %37 {strides = array<i32>} : memref<2x4x128xf32, #tpu.memory_space<vmem>>, vector<2x1x128xf32>,
    %c1_11 = arith.constant 1 : index
    %c0_12 = arith.constant 0 : index
    %38 = memref.load %arg3[%c1_11, %c0_12] : memref<4x4xf32, #tpu.memory_space<smem>>
    %39 = vector.extract_strided_slice %0 {offsets = [0, 0, 0], sizes = [2, 1, 128], strides = [1, 1, 1]} : vector<2x4x128xf32> to vector<2x1x128xf32>
    %40 = vector.shape_cast %39 : vector<2x1x128xf32> to vector<2x128xf32>
    %41 = vector.broadcast %38 : f32 to vector<2x128xf32>
    %42 = arith.mulf %41, %40 : vector<2x128xf32>
    %c1_13 = arith.constant 1 : index
    %c1_14 = arith.constant 1 : index
    %43 = memref.load %arg3[%c1_13, %c1_14] : memref<4x4xf32, #tpu.memory_space<smem>>
    %44 = vector.extract_strided_slice %0 {offsets = [0, 1, 0], sizes = [2, 1, 128], strides = [1, 1, 1]} : vector<2x4x128xf32> to vector<2x1x128xf32>
    %45 = vector.shape_cast %44 : vector<2x1x128xf32> to vector<2x128xf32>
    %46 = vector.broadcast %43 : f32 to vector<2x128xf32>
    %47 = arith.mulf %46, %45 : vector<2x128xf32>
    %48 = arith.addf %42, %47 : vector<2x128xf32>
    %c1_15 = arith.constant 1 : index
    %c2_16 = arith.constant 2 : index
    %49 = memref.load %arg3[%c1_15, %c2_16] : memref<4x4xf32, #tpu.memory_space<smem>>
    %50 = vector.extract_strided_slice %0 {offsets = [0, 2, 0], sizes = [2, 1, 128], strides = [1, 1, 1]} : vector<2x4x128xf32> to vector<2x1x128xf32>
    %51 = vector.shape_cast %50 : vector<2x1x128xf32> to vector<2x128xf32>
    %52 = vector.broadcast %49 : f32 to vector<2x128xf32>
    %53 = arith.mulf %52, %51 : vector<2x128xf32>
    %54 = arith.addf %48, %53 : vector<2x128xf32>
    %c1_17 = arith.constant 1 : index
    %c3_18 = arith.constant 3 : index
    %55 = memref.load %arg3[%c1_17, %c3_18] : memref<4x4xf32, #tpu.memory_space<smem>>
    %56 = vector.extract_strided_slice %0 {offsets = [0, 3, 0], sizes = [2, 1, 128], strides = [1, 1, 1]} : vector<2x4x128xf32> to vector<2x1x128xf32>
    %57 = vector.shape_cast %56 : vector<2x1x128xf32> to vector<2x128xf32>
    %58 = vector.broadcast %55 : f32 to vector<2x128xf32>
    %59 = arith.mulf %58, %57 : vector<2x128xf32>
    %60 = arith.addf %54, %59 : vector<2x128xf32>
    %c1_19 = arith.constant 1 : index
    %61 = memref.load %arg4[%c1_19] : memref<4xf32, #tpu.memory_space<smem>>
    %62 = vector.broadcast %61 : f32 to vector<2x128xf32>
    %63 = arith.addf %60, %62 : vector<2x128xf32>
    %64 = vector.extract_strided_slice %0 {offsets = [0, 1, 0], sizes = [2, 1, 128], strides = [1, 1, 1]} : vector<2x4x128xf32> to vector<2x1x128xf32>
    %65 = vector.shape_cast %64 : vector<2x1x128xf32> to vector<2x128xf32>
    %66 = arith.negf %65 : vector<2x128xf32>
    %67 = math.exp %66 : vector<2x128xf32>
    %cst_20 = arith.constant 1.000000e+00 : f32
    %68 = vector.broadcast %cst_20 : f32 to vector<2x128xf32>
    %69 = arith.addf %68, %67 : vector<2x128xf32>
    %70 = arith.divf %68, %69 : vector<2x128xf32>
    %71 = arith.mulf %63, %70 : vector<2x128xf32>
    %c0_21 = arith.constant 0 : index
    %c1_22 = arith.constant 1 : index
    %c0_23 = arith.constant 0 : index
    %72 = vector.load %arg5[%c0_21, %c1_22, %c0_23] : memref<2x4x128xf32, #tpu.memory_space<vmem>>, vector<2x1x128xf32>
    %73 = vector.shape_cast %72 : vector<2x1x128xf32> to vector<2x128xf32>
    %74 = vector.shape_cast %71 : vector<2x128xf32> to vector<2x1x128xf32>
    tpu.vector_store %arg5[%c0_21, %c1_22, %c0_23], %74 {strides = array<i32>} : memref<2x4x128xf32, #tpu.memory_space<vmem>>, vector<2x1x128xf32>,
    %c2_24 = arith.constant 2 : index
    %c0_25 = arith.constant 0 : index
    %75 = memref.load %arg3[%c2_24, %c0_25] : memref<4x4xf32, #tpu.memory_space<smem>>
    %76 = vector.extract_strided_slice %0 {offsets = [0, 0, 0], sizes = [2, 1, 128], strides = [1, 1, 1]} : vector<2x4x128xf32> to vector<2x1x128xf32>
    %77 = vector.shape_cast %76 : vector<2x1x128xf32> to vector<2x128xf32>
    %78 = vector.broadcast %75 : f32 to vector<2x128xf32>
    %79 = arith.mulf %78, %77 : vector<2x128xf32>
    %c2_26 = arith.constant 2 : index
    %c1_27 = arith.constant 1 : index
    %80 = memref.load %arg3[%c2_26, %c1_27] : memref<4x4xf32, #tpu.memory_space<smem>>
    %81 = vector.extract_strided_slice %0 {offsets = [0, 1, 0], sizes = [2, 1, 128], strides = [1, 1, 1]} : vector<2x4x128xf32> to vector<2x1x128xf32>
    %82 = vector.shape_cast %81 : vector<2x1x128xf32> to vector<2x128xf32>
    %83 = vector.broadcast %80 : f32 to vector<2x128xf32>
    %84 = arith.mulf %83, %82 : vector<2x128xf32>
    %85 = arith.addf %79, %84 : vector<2x128xf32>
    %c2_28 = arith.constant 2 : index
    %c2_29 = arith.constant 2 : index
    %86 = memref.load %arg3[%c2_28, %c2_29] : memref<4x4xf32, #tpu.memory_space<smem>>
    %87 = vector.extract_strided_slice %0 {offsets = [0, 2, 0], sizes = [2, 1, 128], strides = [1, 1, 1]} : vector<2x4x128xf32> to vector<2x1x128xf32>
    %88 = vector.shape_cast %87 : vector<2x1x128xf32> to vector<2x128xf32>
    %89 = vector.broadcast %86 : f32 to vector<2x128xf32>
    %90 = arith.mulf %89, %88 : vector<2x128xf32>
    %91 = arith.addf %85, %90 : vector<2x128xf32>
    %c2_30 = arith.constant 2 : index
    %c3_31 = arith.constant 3 : index
    %92 = memref.load %arg3[%c2_30, %c3_31] : memref<4x4xf32, #tpu.memory_space<smem>>
    %93 = vector.extract_strided_slice %0 {offsets = [0, 3, 0], sizes = [2, 1, 128], strides = [1, 1, 1]} : vector<2x4x128xf32> to vector<2x1x128xf32>
    %94 = vector.shape_cast %93 : vector<2x1x128xf32> to vector<2x128xf32>
    %95 = vector.broadcast %92 : f32 to vector<2x128xf32>
    %96 = arith.mulf %95, %94 : vector<2x128xf32>
    %97 = arith.addf %91, %96 : vector<2x128xf32>
    %c2_32 = arith.constant 2 : index
    %98 = memref.load %arg4[%c2_32] : memref<4xf32, #tpu.memory_space<smem>>
    %99 = vector.broadcast %98 : f32 to vector<2x128xf32>
    %100 = arith.addf %97, %99 : vector<2x128xf32>
    %101 = vector.extract_strided_slice %0 {offsets = [0, 2, 0], sizes = [2, 1, 128], strides = [1, 1, 1]} : vector<2x4x128xf32> to vector<2x1x128xf32>
    %102 = vector.shape_cast %101 : vector<2x1x128xf32> to vector<2x128xf32>
    %103 = arith.negf %102 : vector<2x128xf32>
    %104 = math.exp %103 : vector<2x128xf32>
    %cst_33 = arith.constant 1.000000e+00 : f32
    %105 = vector.broadcast %cst_33 : f32 to vector<2x128xf32>
    %106 = arith.addf %105, %104 : vector<2x128xf32>
    %107 = arith.divf %105, %106 : vector<2x128xf32>
    %108 = arith.mulf %100, %107 : vector<2x128xf32>
    %c0_34 = arith.constant 0 : index
    %c2_35 = arith.constant 2 : index
    %c0_36 = arith.constant 0 : index
    %109 = vector.load %arg5[%c0_34, %c2_35, %c0_36] : memref<2x4x128xf32, #tpu.memory_space<vmem>>, vector<2x1x128xf32>
    %110 = vector.shape_cast %109 : vector<2x1x128xf32> to vector<2x128xf32>
    %111 = vector.shape_cast %108 : vector<2x128xf32> to vector<2x1x128xf32>
    tpu.vector_store %arg5[%c0_34, %c2_35, %c0_36], %111 {strides = array<i32>} : memref<2x4x128xf32, #tpu.memory_space<vmem>>, vector<2x1x128xf32>,
    %c3_37 = arith.constant 3 : index
    %c0_38 = arith.constant 0 : index
    %112 = memref.load %arg3[%c3_37, %c0_38] : memref<4x4xf32, #tpu.memory_space<smem>>
    %113 = vector.extract_strided_slice %0 {offsets = [0, 0, 0], sizes = [2, 1, 128], strides = [1, 1, 1]} : vector<2x4x128xf32> to vector<2x1x128xf32>
    %114 = vector.shape_cast %113 : vector<2x1x128xf32> to vector<2x128xf32>
    %115 = vector.broadcast %112 : f32 to vector<2x128xf32>
    %116 = arith.mulf %115, %114 : vector<2x128xf32>
    %c3_39 = arith.constant 3 : index
    %c1_40 = arith.constant 1 : index
    %117 = memref.load %arg3[%c3_39, %c1_40] : memref<4x4xf32, #tpu.memory_space<smem>>
    %118 = vector.extract_strided_slice %0 {offsets = [0, 1, 0], sizes = [2, 1, 128], strides = [1, 1, 1]} : vector<2x4x128xf32> to vector<2x1x128xf32>
    %119 = vector.shape_cast %118 : vector<2x1x128xf32> to vector<2x128xf32>
    %120 = vector.broadcast %117 : f32 to vector<2x128xf32>
    %121 = arith.mulf %120, %119 : vector<2x128xf32>
    %122 = arith.addf %116, %121 : vector<2x128xf32>
    %c3_41 = arith.constant 3 : index
    %c2_42 = arith.constant 2 : index
    %123 = memref.load %arg3[%c3_41, %c2_42] : memref<4x4xf32, #tpu.memory_space<smem>>
    %124 = vector.extract_strided_slice %0 {offsets = [0, 2, 0], sizes = [2, 1, 128], strides = [1, 1, 1]} : vector<2x4x128xf32> to vector<2x1x128xf32>
    %125 = vector.shape_cast %124 : vector<2x1x128xf32> to vector<2x128xf32>
    %126 = vector.broadcast %123 : f32 to vector<2x128xf32>
    %127 = arith.mulf %126, %125 : vector<2x128xf32>
    %128 = arith.addf %122, %127 : vector<2x128xf32>
    %c3_43 = arith.constant 3 : index
    %c3_44 = arith.constant 3 : index
    %129 = memref.load %arg3[%c3_43, %c3_44] : memref<4x4xf32, #tpu.memory_space<smem>>
    %130 = vector.extract_strided_slice %0 {offsets = [0, 3, 0], sizes = [2, 1, 128], strides = [1, 1, 1]} : vector<2x4x128xf32> to vector<2x1x128xf32>
    %131 = vector.shape_cast %130 : vector<2x1x128xf32> to vector<2x128xf32>
    %132 = vector.broadcast %129 : f32 to vector<2x128xf32>
    %133 = arith.mulf %132, %131 : vector<2x128xf32>
    %134 = arith.addf %128, %133 : vector<2x128xf32>
    %c3_45 = arith.constant 3 : index
    %135 = memref.load %arg4[%c3_45] : memref<4xf32, #tpu.memory_space<smem>>
    %136 = vector.broadcast %135 : f32 to vector<2x128xf32>
    %137 = arith.addf %134, %136 : vector<2x128xf32>
    %138 = vector.extract_strided_slice %0 {offsets = [0, 3, 0], sizes = [2, 1, 128], strides = [1, 1, 1]} : vector<2x4x128xf32> to vector<2x1x128xf32>
    %139 = vector.shape_cast %138 : vector<2x1x128xf32> to vector<2x128xf32>
    %140 = arith.negf %139 : vector<2x128xf32>
    %141 = math.exp %140 : vector<2x128xf32>
    %cst_46 = arith.constant 1.000000e+00 : f32
    %142 = vector.broadcast %cst_46 : f32 to vector<2x128xf32>
    %143 = arith.addf %142, %141 : vector<2x128xf32>
    %144 = arith.divf %142, %143 : vector<2x128xf32>
    %145 = arith.mulf %137, %144 : vector<2x128xf32>
    %c0_47 = arith.constant 0 : index
    %c3_48 = arith.constant 3 : index
    %c0_49 = arith.constant 0 : index
    %146 = vector.load %arg5[%c0_47, %c3_48, %c0_49] : memref<2x4x128xf32, #tpu.memory_space<vmem>>, vector<2x1x128xf32>
    %147 = vector.shape_cast %146 : vector<2x1x128xf32> to vector<2x128xf32>
    %148 = vector.shape_cast %145 : vector<2x128xf32> to vector<2x1x128xf32>
    tpu.vector_store %arg5[%c0_47, %c3_48, %c0_49], %148 {strides = array<i32>} : memref<2x4x128xf32, #tpu.memory_space<vmem>>, vector<2x1x128xf32>,
    return
  }
  func.func @transform_0(%arg0: i32, %arg1: i32) -> (i32, i32, i32) {
    %c0_i32 = arith.constant 0 : i32
    %c0_i32_0 = arith.constant 0 : i32
    return %arg0, %c0_i32, %arg1 : i32, i32, i32
  }
  func.func @transform_1(%arg0: i32, %arg1: i32) -> (i32, i32) {
    %c0_i32 = arith.constant 0 : i32
    %c0_i32_0 = arith.constant 0 : i32
    %c0_i32_1 = arith.constant 0 : i32
    return %c0_i32, %c0_i32_0 : i32, i32
  }
  func.func @transform_2(%arg0: i32, %arg1: i32) -> i32 {
    %c0_i32 = arith.constant 0 : i32
    %c0_i32_0 = arith.constant 0 : i32
    return %c0_i32 : i32
  }
  func.func @transform_3(%arg0: i32, %arg1: i32) -> (i32, i32, i32) {
    %c0_i32 = arith.constant 0 : i32
    %c0_i32_0 = arith.constant 0 : i32
    return %arg0, %c0_i32, %arg1 : i32, i32, i32
  }
}

</mosaic_0001>

<llo_original>
// kernel: tpu_custom_call.1
$region0: #{tpu_custom_call.1}
  #allocation0 [shape = 'u32[]', space=smem, size = 0x4, offset = 0x4, fixed_abs, tag = 'smem constant byte address 0x4 - core index']
  #allocation1 [shape = 'u32[72,128]{1,0:T(1,128)}', space=vmem, size = 0x9000, scoped, tag = 'internal scratch']
  %s0 = inlined_call_operand.hbm [shape: f32[2,4,256], index: 0, kind: input, shape index: {}]
  %s1 = inlined_call_operand.hbm [shape: f32[4,4], index: 1, kind: input, shape index: {}]
  %s2 = inlined_call_operand.vmem [shape: f32[4], index: 2, kind: input, shape index: {}]
  %s3 = inlined_call_operand.hbm [shape: f32[2,4,256], index: 3, kind: output, shape index: {}]
  %s4 = sld [smem:[#allocation0]]
  $region57: #{tpu_custom_call.1} parent=0
    _
  %s6 = ssub.s32 1, %s4
  %s7 = scalar_select 0, %s6, %s4
  $region1: #{tpu_custom_call.1} parent=0
    #allocation2 [shape = 'u8[8192]{0}', space=vmem, size = 0x2000, scoped, tag = 'input window, operand 0']
    #allocation3 [shape = 's32[2]{0}', space=sflag, size = 0x8, scoped, tag = 'scoped memory for tpu_custom_call.1']
    #allocation4 [shape = 's32[2]{0}', space=sflag, size = 0x8, scoped, tag = 'scoped memory for tpu_custom_call.1']
    #allocation5 [shape = 's32[2]{0}', space=sflag, size = 0x8, scoped, tag = 'scoped memory for tpu_custom_call.1']
    #allocation6 [shape = 's32[2]{0}', space=sflag, size = 0x8, scoped, tag = 'scoped memory for tpu_custom_call.1']
    #allocation7 [shape = 'u8[2048]{0}', space=smem, size = 0x800, scoped, tag = 'input window, operand 1, single buffered']
    #allocation8 [shape = 'u8[512]{0}', space=smem, size = 0x200, scoped, tag = 'input window, operand 2, single buffered']
    #allocation9 [shape = 'u8[8192]{0}', space=vmem, size = 0x2000, scoped, tag = 'output window, operand 0']
    %8 = vsyncpa [#allocation3], 0
    %s9 = scalar_lea.sflag [#allocation3], 1
    %10 = vsyncpa %s9, 0
    %11 = vsyncpa [#allocation5], 0
    %12 = vsyncpa [#allocation6], 0
    %13 = vsyncpa [#allocation4], 0
    %s14 = scalar_lea.sflag [#allocation4], 1
    %15 = vsyncpa %s14, 0
    loop: start=0, step=1, limit=4
    $region2: #{tpu_custom_call.1} parent=1 // loop_pre_header
      _
    $region3: #{tpu_custom_call.1} parent=1 // loop_header
      %s17 = sphi 0, %s21
      %p18 = scmp.ge.s32.totalorder %s17, 4
      %s24 = sphi 0, %s36
      %s25 = sphi 0, %s32
      %s26 = sphi 0, %s24
      %s27 = sphi 0, %s25
      %s28 = sphi 0, %s26
      %s29 = sphi 0, %s27
      %s41 = sphi 0, %s43
      %s44 = sphi 0, %s41
      %s45 = sphi 0, %s44
      %s61 = sphi 0, %s45
      %s65 = sphi 0, %s65
      %s67 = sphi 0, %s65
      %s68 = sphi 0, %s67
      %s82 = sphi 0, %s68
      %s86 = sphi 0, %s86
      %s88 = sphi 0, %s86
      %s89 = sphi 0, %s88
      %s103 = sphi 0, %s89
      %s111 = sphi 0, %s113
      %s114 = sphi 0, %s111
      %s115 = sphi 0, %s114
      %s131 = sphi 0, %s115
    $region4: #{tpu_custom_call.1} parent=1 // loop_header_branch
      %20 = sbr.rel (%p18) target = $region8
    $region5: #{tpu_custom_call.1} parent=1 // loop_body
      %s22 = ssub.s32 %s17, 1
      %s23 = ssub.s32 %s17, 2
      %s30 = sadd.s32 1, %s25
      %p31 = scmp.ge.s32.totalorder %s30, 2
      %s32 = scalar_select %p31, 0, %s30
      %s33 = sadd.s32 1, %s24
      %s34 = scalar_select %p31, %s33, %s24
      %p35 = scmp.ge.s32.totalorder %s34, 1
      %s36 = scalar_select %p35, 0, %s34
      %s37 = ssub.s32 %s24, %s36
      %s38 = ssub.s32 %s25, %s32
      %s39 = sor.u32 %s37, %s38
      %p40 = scmp.eq.s32.totalorder %s39, 0
      %s42 = sadd.s32 %s41, 1
      %s43 = scalar_select %p40, %s41, %s42
      %p46 = pneg %p40
      %p47 = scmp.eq.s32.totalorder %s17, 1
      %p48 = por %p46, %p47
      %p49 = scmp.ne.s32.totalorder %s41, %s44
      %p50 = scmp.eq.s32.totalorder %s17, 0
      %p51 = por %p49, %p50
      %p52 = scmp.ne.s32.totalorder %s41, %s44
      %p53 = scmp.eq.s32.totalorder %s22, 1
      %p54 = por %p52, %p53
      %p55 = scmp.ne.s32.totalorder %s44, %s45
      %p56 = scmp.eq.s32.totalorder %s22, 0
      %p57 = por %p55, %p56
      %p58 = scmp.ne.s32.totalorder %s44, %s45
      %p59 = scmp.eq.s32.totalorder %s23, 1
      %p60 = por %p58, %p59
      %p62 = scmp.ne.s32.totalorder %s45, %s61
      %p63 = scmp.eq.s32.totalorder %s23, 0
      %p64 = por %p62, %p63
      %s66 = sadd.s32 %s65, 1
      %p69 = scmp.eq.s32.totalorder %s17, 1
      %p70 = scmp.ne.s32.totalorder %s65, %s67
      %p71 = scmp.eq.s32.totalorder %s17, 0
      %p72 = por %p70, %p71
      %p73 = scmp.ne.s32.totalorder %s65, %s67
      %p74 = scmp.eq.s32.totalorder %s22, 1
      %p75 = por %p73, %p74
      %p76 = scmp.ne.s32.totalorder %s67, %s68
      %p77 = scmp.eq.s32.totalorder %s22, 0
      %p78 = por %p76, %p77
      %p79 = scmp.ne.s32.totalorder %s67, %s68
      %p80 = scmp.eq.s32.totalorder %s23, 1
      %p81 = por %p79, %p80
      %p83 = scmp.ne.s32.totalorder %s68, %s82
      %p84 = scmp.eq.s32.totalorder %s23, 0
      %p85 = por %p83, %p84
      %s87 = sadd.s32 %s86, 1
      %p90 = scmp.eq.s32.totalorder %s17, 1
      %p91 = scmp.ne.s32.totalorder %s86, %s88
      %p92 = scmp.eq.s32.totalorder %s17, 0
      %p93 = por %p91, %p92
      %p94 = scmp.ne.s32.totalorder %s86, %s88
      %p95 = scmp.eq.s32.totalorder %s22, 1
      %p96 = por %p94, %p95
      %p97 = scmp.ne.s32.totalorder %s88, %s89
      %p98 = scmp.eq.s32.totalorder %s22, 0
      %p99 = por %p97, %p98
      %p100 = scmp.ne.s32.totalorder %s88, %s89
      %p101 = scmp.eq.s32.totalorder %s23, 1
      %p102 = por %p100, %p101
      %p104 = scmp.ne.s32.totalorder %s89, %s103
      %p105 = scmp.eq.s32.totalorder %s23, 0
      %p106 = por %p104, %p105
      %s107 = ssub.s32 %s24, %s36
      %s108 = ssub.s32 %s25, %s32
      %s109 = sor.u32 %s107, %s108
      %p110 = scmp.eq.s32.totalorder %s109, 0
      %s112 = sadd.s32 %s111, 1
      %s113 = scalar_select %p110, %s111, %s112
      %p116 = pneg %p110
      %p117 = scmp.eq.s32.totalorder %s17, 1
      %p118 = por %p116, %p117
      %p119 = scmp.ne.s32.totalorder %s111, %s114
      %p120 = scmp.eq.s32.totalorder %s17, 0
      %p121 = por %p119, %p120
      %p122 = scmp.ne.s32.totalorder %s111, %s114
      %p123 = scmp.eq.s32.totalorder %s22, 1
      %p124 = por %p122, %p123
      %p125 = scmp.ne.s32.totalorder %s114, %s115
      %p126 = scmp.eq.s32.totalorder %s22, 0
      %p127 = por %p125, %p126
      %p128 = scmp.ne.s32.totalorder %s114, %s115
      %p129 = scmp.eq.s32.totalorder %s23, 1
      %p130 = por %p128, %p129
      %p132 = scmp.ne.s32.totalorder %s115, %s131
      %p133 = scmp.eq.s32.totalorder %s23, 0
      %p134 = por %p132, %p133
      %p135 = scmp.le.s32.totalorder 1, %s17
      %p136 = scmp.lt.s32.totalorder %s17, 3
      %p137 = pnand %p135, %p136
      %p138 = pneg %p137
      // Predicated region
      $region9: #{tpu_custom_call.1} parent=5 // pred_check
        _
      $region10: #{tpu_custom_call.1} parent=5 // pred_check_branch
        %140 = sbr.rel (%p137) target = $region12
      $region11: #{tpu_custom_call.1} parent=5 // pred_region
        %s141 = ssub.s32 %s17, 1
        // Predicated region
        $region13: #{tpu_custom_call.1} parent=11 // pred_check
          %p142 = pneg %p78
        $region14: #{tpu_custom_call.1} parent=11 // pred_check_branch
          %144 = sbr.rel (%p142) target = $region16
        $region15: #{tpu_custom_call.1} parent=11 // pred_region
          %146 = vsyncadd [#allocation5], 0
          %s148 = sshll.u32 %s1, 4
          %s149 = int_to_ptr.hbm [resolvable:$true] %s148
          %151 = dma.hbm_to_smem %s149, 64, [#allocation7], [#allocation5]
        $region16: #{tpu_custom_call.1} parent=11 // pred_fallthru
          _
        // Predicated region
        $region17: #{tpu_custom_call.1} parent=11 // pred_check
          %p152 = pneg %p99
        $region18: #{tpu_custom_call.1} parent=11 // pred_check_branch
          %154 = sbr.rel (%p152) target = $region20
        $region19: #{tpu_custom_call.1} parent=11 // pred_region
          %156 = vsyncadd [#allocation6], 0
          %s158 = sshll.u32 %s2, 4
          %s159 = int_to_ptr.vmem [resolvable:$true] %s158
          %161 = dma.vmem_to_smem %s159, 16, [#allocation8], [#allocation6]
        $region20: #{tpu_custom_call.1} parent=11 // pred_fallthru
          _
      $region12: #{tpu_custom_call.1} parent=5 // pred_fallthru
        _
      %p162 = scmp.lt.s32.totalorder %s17, 2
      // Predicated region
      $region21: #{tpu_custom_call.1} parent=5 // pred_check
        %p163 = pneg %p162
      $region22: #{tpu_custom_call.1} parent=5 // pred_check_branch
        %165 = sbr.rel (%p163) target = $region24
      $region23: #{tpu_custom_call.1} parent=5 // pred_region
        // Predicated region
        $region25: #{tpu_custom_call.1} parent=23 // pred_check
          %p166 = pneg %p51
        $region26: #{tpu_custom_call.1} parent=23 // pred_check_branch
          %168 = sbr.rel (%p166) target = $region28
        $region27: #{tpu_custom_call.1} parent=23 // pred_region
          %s169 = sand.u32 %s41, 1
          %s170 = scalar_lea.sflag [#allocation3], %s169
          %s171 = sand.u32 %s41, 1
          %s172 = smul.addr %s171, 8
          %s173 = scalar_lea.vmem [#allocation2], %s172
          %s174 = smul.u32 2, %s24
          %176 = vsyncadd %s170, 0
          %s177 = smul.addr %s174, 2
          %s178 = sadd.s32 %s25, %s177
          %s179 = smul.addr %s178, 4
          %s180 = scalar_lea.hbm %s0, %s179
          %s181 = sshll.u32 %s180, 4
          %s182 = int_to_ptr.hbm [resolvable:$true] %s181
          %s183 = sshll.u32 %s173, 4
          %s184 = int_to_ptr.vmem [resolvable:$true] %s183
          %189 = dma.hbm_to_vmem [thread:$0]  %s182, 128, %s184, %s170, 128, 64, 4
        $region28: #{tpu_custom_call.1} parent=23 // pred_fallthru
          _
      $region24: #{tpu_custom_call.1} parent=5 // pred_fallthru
        _
      %p190 = scmp.le.s32.totalorder 1, %s17
      %p191 = scmp.lt.s32.totalorder %s17, 3
      %p192 = pnand %p190, %p191
      %p193 = pneg %p192
      // Predicated region
      $region29: #{tpu_custom_call.1} parent=5 // pred_check
        _
      $region30: #{tpu_custom_call.1} parent=5 // pred_check_branch
        %195 = sbr.rel (%p192) target = $region32
      $region31: #{tpu_custom_call.1} parent=5 // pred_region
        %s196 = ssub.s32 %s17, 1
        %s197 = sand.u32 %s44, 1
        %s198 = scalar_lea.sflag [#allocation3], %s197
        %s199 = sand.u32 %s44, 1
        %s200 = smul.addr %s199, 8
        %s201 = scalar_lea.vmem [#allocation2], %s200
        // Predicated region
        $region33: #{tpu_custom_call.1} parent=31 // pred_check
          %p202 = pneg %p57
        $region34: #{tpu_custom_call.1} parent=31 // pred_check_branch
          %204 = sbr.rel (%p202) target = $region36
        $region35: #{tpu_custom_call.1} parent=31 // pred_region
          %206 = dma.done %s198, 128
        $region36: #{tpu_custom_call.1} parent=31 // pred_fallthru
          _
        // Predicated region
        $region37: #{tpu_custom_call.1} parent=31 // pred_check
          %p207 = pneg %p78
        $region38: #{tpu_custom_call.1} parent=31 // pred_check_branch
          %209 = sbr.rel (%p207) target = $region40
        $region39: #{tpu_custom_call.1} parent=31 // pred_region
          %211 = dma.done [#allocation5], 64
        $region40: #{tpu_custom_call.1} parent=31 // pred_fallthru
          _
        // Predicated region
        $region41: #{tpu_custom_call.1} parent=31 // pred_check
          %p212 = pneg %p99
        $region42: #{tpu_custom_call.1} parent=31 // pred_check_branch
          %214 = sbr.rel (%p212) target = $region44
        $region43: #{tpu_custom_call.1} parent=31 // pred_region
          %216 = dma.done [#allocation6], 16
        $region44: #{tpu_custom_call.1} parent=31 // pred_fallthru
          _
        %217 = sfence
        %s218 = sand.u32 %s44, 1
        %s219 = scalar_lea.sflag [#allocation3], %s218
        %s220 = sand.u32 %s44, 1
        %s221 = smul.addr %s220, 8
        %s222 = scalar_lea.vmem [#allocation2], %s221
        %p223 = pneg %p57
        %p224 = pneg %p54
        %p225 = pneg %p78
        %p226 = pneg %p75
        %p227 = pneg %p99
        %p228 = pneg %p96
        %p229 = pneg %p127
        %p230 = pneg %p124
        %s231 = sand.u32 %s114, 1
        %s232 = scalar_lea.sflag [#allocation4], %s231
        %s233 = sand.u32 %s114, 1
        %s234 = smul.addr %s233, 8
        %s235 = scalar_lea.vmem [#allocation9], %s234
        %s236 = smul.u32 2, %s26
        %s237 = smul.u32 2, %s26
        %v238 = vld [vmem:[%s201] sm:$0xf]
        %v239 = vld [vmem:[%s201 + $0x4] sm:$0xf]
        %s240 = sld [smem:[#allocation7]]
        %v241 = vstv %s240
        %v242 = vmul.f32 %v241, %v238
        %v243 = vmul.f32 %v241, %v239
        %s244 = sld [smem:[#allocation7 + $0x1]]
        %v245 = vstv %s244
        %v246 = vmul.f32 %v245, %v238
        %v247 = vmul.f32 %v245, %v239
        %v250 = vrot.slane %v246, 1
        %v251 = vrot.slane %v247, 1
        %v254 = vadd.f32 %v242, %v250
        %v255 = vadd.f32 %v243, %v251
        %s256 = sld [smem:[#allocation7 + $0x2]]
        %v257 = vstv %s256
        %v258 = vmul.f32 %v257, %v238
        %v259 = vmul.f32 %v257, %v239
        %v262 = vrot.slane %v258, 2
        %v263 = vrot.slane %v259, 2
        %v266 = vadd.f32 %v254, %v262
        %v267 = vadd.f32 %v255, %v263
        %s268 = sld [smem:[#allocation7 + $0x3]]
        %v269 = vstv %s268
        %v270 = vmul.f32 %v269, %v238
        %v271 = vmul.f32 %v269, %v239
        %v274 = vrot.slane %v270, 3
        %v275 = vrot.slane %v271, 3
        %v278 = vadd.f32 %v266, %v274
        %v279 = vadd.f32 %v267, %v275
        %s280 = sld [smem:[#allocation8]]
        %v281 = vstv %s280
        %v282 = vadd.f32 %v278, %v281
        %v283 = vadd.f32 %v279, %v281
        %v284 = vxor.u32 %v238, 2147483648
        %v285 = vxor.u32 %v239, 2147483648
        %v286 = vmul.f32 %v284, 1.442695
        %v287 = vpow.pop %v286
        %v288 = vmul.f32 %v285, 1.442695
        %v289 = vpow.pop %v288
        %v290 = vadd.f32 %v287, 1.0
        %v291 = vadd.f32 %v289, 1.0
        %v292 = vrcp.pop %v290
        %v293 = vmul.f32 %v290, %v292
        %v294 = vsub.f32 1.0, %v293
        %v295 = vmul.f32 %v292, %v294
        %v296 = vadd.f32 %v292, %v295
        %vm297 = vweird.f32 %v290
        %vm298 = vweird.f32 %v292
        %vm299 = vmor %vm297, %vm298
        %v300 = vsel %vm299, %v292, %v296
        %v301 = vand.u32 2147483647, %v290
        %vm302 = vcmp.eq.f32.partialorder %v301, 8.507059e+37
        %v303 = vand.u32 %v290, 2147483648
        %v304 = vor.u32 1.1754944e-38, %v303
        %v305 = vsel %vm302, %v304, %v300
        %v306 = vmul.f32 1.0, %v305
        %v307 = vrcp.pop %v291
        %v308 = vmul.f32 %v291, %v307
        %v309 = vsub.f32 1.0, %v308
        %v310 = vmul.f32 %v307, %v309
        %v311 = vadd.f32 %v307, %v310
        %vm312 = vweird.f32 %v291
        %vm313 = vweird.f32 %v307
        %vm314 = vmor %vm312, %vm313
        %v315 = vsel %vm314, %v307, %v311
        %v316 = vand.u32 2147483647, %v291
        %vm317 = vcmp.eq.f32.partialorder %v316, 8.507059e+37
        %v318 = vand.u32 %v291, 2147483648
        %v319 = vor.u32 1.1754944e-38, %v318
        %v320 = vsel %vm317, %v319, %v315
        %v321 = vmul.f32 1.0, %v320
        %v322 = vmul.f32 %v282, %v306
        %v323 = vmul.f32 %v283, %v321
        %324 = vst [vmem:[%s235] sm:$0x1] %v322
        %325 = vst [vmem:[%s235 + $0x4] sm:$0x1] %v323
        %s326 = sld [smem:[#allocation7 + $0x80]]
        %v327 = vstv %s326
        %v328 = vmul.f32 %v327, %v238
        %v329 = vmul.f32 %v327, %v239
        %s330 = sld [smem:[#allocation7 + $0x81]]
        %v331 = vstv %s330
        %v332 = vmul.f32 %v331, %v238
        %v333 = vmul.f32 %v331, %v239
        %v336 = vrot.slane %v332, 1
        %v337 = vrot.slane %v333, 1
        %v340 = vadd.f32 %v328, %v336
        %v341 = vadd.f32 %v329, %v337
        %s342 = sld [smem:[#allocation7 + $0x82]]
        %v343 = vstv %s342
        %v344 = vmul.f32 %v343, %v238
        %v345 = vmul.f32 %v343, %v239
        %v348 = vrot.slane %v344, 2
        %v349 = vrot.slane %v345, 2
        %v352 = vadd.f32 %v340, %v348
        %v353 = vadd.f32 %v341, %v349
        %s354 = sld [smem:[#allocation7 + $0x83]]
        %v355 = vstv %s354
        %v356 = vmul.f32 %v355, %v238
        %v357 = vmul.f32 %v355, %v239
        %v360 = vrot.slane %v356, 3
        %v361 = vrot.slane %v357, 3
        %v364 = vadd.f32 %v352, %v360
        %v365 = vadd.f32 %v353, %v361
        %s366 = sld [smem:[#allocation8 + $0x1]]
        %v367 = vstv %s366
        %v368 = vadd.f32 %v364, %v367
        %v369 = vadd.f32 %v365, %v367
        %v372 = vrot.slane %v306, 1
        %v373 = vrot.slane %v321, 1
        %v376 = vmul.f32 %v368, %v372
        %v377 = vmul.f32 %v369, %v373
        %378 = vst [vmem:[%s235 + $0x1] sm:$0x1] %v376
        %379 = vst [vmem:[%s235 + $0x5] sm:$0x1] %v377
        %s380 = sld [smem:[#allocation7 + $0x100]]
        %v381 = vstv %s380
        %v382 = vmul.f32 %v381, %v238
        %v383 = vmul.f32 %v381, %v239
        %s384 = sld [smem:[#allocation7 + $0x101]]
        %v385 = vstv %s384
        %v386 = vmul.f32 %v385, %v238
        %v387 = vmul.f32 %v385, %v239
        %v390 = vrot.slane %v386, 1
        %v391 = vrot.slane %v387, 1
        %v394 = vadd.f32 %v382, %v390
        %v395 = vadd.f32 %v383, %v391
        %s396 = sld [smem:[#allocation7 + $0x102]]
        %v397 = vstv %s396
        %v398 = vmul.f32 %v397, %v238
        %v399 = vmul.f32 %v397, %v239
        %v402 = vrot.slane %v398, 2
        %v403 = vrot.slane %v399, 2
        %v406 = vadd.f32 %v394, %v402
        %v407 = vadd.f32 %v395, %v403
        %s408 = sld [smem:[#allocation7 + $0x103]]
        %v409 = vstv %s408
        %v410 = vmul.f32 %v409, %v238
        %v411 = vmul.f32 %v409, %v239
        %v414 = vrot.slane %v410, 3
        %v415 = vrot.slane %v411, 3
        %v418 = vadd.f32 %v406, %v414
        %v419 = vadd.f32 %v407, %v415
        %s420 = sld [smem:[#allocation8 + $0x2]]
        %v421 = vstv %s420
        %v422 = vadd.f32 %v418, %v421
        %v423 = vadd.f32 %v419, %v421
        %v424 = vrot.slane %v306, 2
        %v425 = vrot.slane %v321, 2
        %v428 = vmul.f32 %v422, %v424
        %v429 = vmul.f32 %v423, %v425
        %430 = vst [vmem:[%s235 + $0x2] sm:$0x1] %v428
        %431 = vst [vmem:[%s235 + $0x6] sm:$0x1] %v429
        %s432 = sld [smem:[#allocation7 + $0x180]]
        %v433 = vstv %s432
        %v434 = vmul.f32 %v433, %v238
        %v435 = vmul.f32 %v433, %v239
        %s436 = sld [smem:[#allocation7 + $0x181]]
        %v437 = vstv %s436
        %v438 = vmul.f32 %v437, %v238
        %v439 = vmul.f32 %v437, %v239
        %v442 = vrot.slane %v438, 1
        %v443 = vrot.slane %v439, 1
        %v446 = vadd.f32 %v434, %v442
        %v447 = vadd.f32 %v435, %v443
        %s448 = sld [smem:[#allocation7 + $0x182]]
        %v449 = vstv %s448
        %v450 = vmul.f32 %v449, %v238
        %v451 = vmul.f32 %v449, %v239
        %v454 = vrot.slane %v450, 2
        %v455 = vrot.slane %v451, 2
        %v458 = vadd.f32 %v446, %v454
        %v459 = vadd.f32 %v447, %v455
        %s460 = sld [smem:[#allocation7 + $0x183]]
        %v461 = vstv %s460
        %v462 = vmul.f32 %v461, %v238
        %v463 = vmul.f32 %v461, %v239
        %v466 = vrot.slane %v462, 3
        %v467 = vrot.slane %v463, 3
        %v470 = vadd.f32 %v458, %v466
        %v471 = vadd.f32 %v459, %v467
        %s472 = sld [smem:[#allocation8 + $0x3]]
        %v473 = vstv %s472
        %v474 = vadd.f32 %v470, %v473
        %v475 = vadd.f32 %v471, %v473
        %v476 = vrot.slane %v306, 3
        %v477 = vrot.slane %v321, 3
        %v480 = vmul.f32 %v474, %v476
        %v481 = vmul.f32 %v475, %v477
        %482 = vst [vmem:[%s235 + $0x3] sm:$0x1] %v480
        %483 = vst [vmem:[%s235 + $0x7] sm:$0x1] %v481
        %s484 = sand.u32 %s114, 1
        %s485 = scalar_lea.sflag [#allocation4], %s484
        %s486 = sand.u32 %s114, 1
        %s487 = smul.addr %s486, 8
        %s488 = scalar_lea.vmem [#allocation9], %s487
        // Predicated region
        $region45: #{tpu_custom_call.1} parent=31 // pred_check
          %p489 = pneg %p124
        $region46: #{tpu_custom_call.1} parent=31 // pred_check_branch
          %491 = sbr.rel (%p489) target = $region48
        $region47: #{tpu_custom_call.1} parent=31 // pred_region
          %s492 = smul.u32 2, %s26
          %494 = vsyncadd %s485, 0
          %s495 = smul.addr %s492, 2
          %s496 = sadd.s32 %s27, %s495
          %s497 = smul.addr %s496, 4
          %s498 = scalar_lea.hbm %s3, %s497
          %s499 = sshll.u32 %s488, 4
          %s500 = int_to_ptr.vmem [resolvable:$true] %s499
          %s501 = sshll.u32 %s498, 4
          %s502 = int_to_ptr.hbm [resolvable:$true] %s501
          %507 = dma.vmem_to_hbm [thread:$0]  %s500, 128, %s502, %s485, 64, 128, 4
        $region48: #{tpu_custom_call.1} parent=31 // pred_fallthru
          _
      $region32: #{tpu_custom_call.1} parent=5 // pred_fallthru
        _
      %p508 = scmp.le.s32.totalorder 2, %s17
      // Predicated region
      $region49: #{tpu_custom_call.1} parent=5 // pred_check
        %p509 = pneg %p508
      $region50: #{tpu_custom_call.1} parent=5 // pred_check_branch
        %511 = sbr.rel (%p509) target = $region52
      $region51: #{tpu_custom_call.1} parent=5 // pred_region
        %s512 = ssub.s32 %s17, 2
        // Predicated region
        $region53: #{tpu_custom_call.1} parent=51 // pred_check
          %p513 = pneg %p130
        $region54: #{tpu_custom_call.1} parent=51 // pred_check_branch
          %515 = sbr.rel (%p513) target = $region56
        $region55: #{tpu_custom_call.1} parent=51 // pred_region
          %s516 = sand.u32 %s115, 1
          %s517 = scalar_lea.sflag [#allocation4], %s516
          %s518 = sand.u32 %s115, 1
          %s519 = smul.addr %s518, 8
          %s520 = scalar_lea.vmem [#allocation9], %s519
          %522 = dma.done %s517, 128
        $region56: #{tpu_custom_call.1} parent=51 // pred_fallthru
          _
      $region52: #{tpu_custom_call.1} parent=5 // pred_fallthru
        _
    $region6: #{tpu_custom_call.1} parent=1 // loop_footer
      %s21 = sadd.s32 1, %s17
    $region7: #{tpu_custom_call.1} parent=1 // loop_footer_branch
      %16 = sbr.rel target = $region3
    $region8: #{tpu_custom_call.1} parent=1 // loop_exit
      _
    %523 = vsyncpa [#allocation3], 1
    %s524 = scalar_lea.sflag [#allocation3], 1
    %525 = vsyncpa %s524, 1
    %526 = vsyncpa [#allocation4], 1
    %s527 = scalar_lea.sflag [#allocation4], 1
    %528 = vsyncpa %s527, 1
    %529 = vsyncpa [#allocation5], 1
    %s530 = scalar_lea.sflag [#allocation5], 1
    %531 = vsyncpa %s530, 1
    %532 = vsyncpa [#allocation6], 1
    %s533 = scalar_lea.sflag [#allocation6], 1
    %534 = vsyncpa %s533, 1

</llo_original>
